<compile_context>
chip_gen: v7x
topology: tpu7x:2x2x1
jax: 0.10.0
libtpu: 0.0.40
codegen_flags: <defaults>
</compile_context>

<pallas_src>
import jax
import jax.numpy as jnp
import numpy as np
from jax.experimental import pallas as pl
from jax.experimental.pallas import tpu as pltpu


_LANES = 1024          # lane-dense rows for large inputs (unmasked full-vreg stores)
_ROW_TILE = 512        # 512 x 1024 f32 = 2 MiB per block; safe on v5e/v6e/v7x defaults
_PALLAS_MIN_ELEMS = 1 << 20   # below this, fused XLA elementwise is strictly faster


def _gauss_kernel(params_ref, x_ref, y_ref):
    # params_ref : SMEM (2,) f32 -> mean = params_ref[0], coef = params_ref[1]
    #              where coef = -1 / (2 * std^2), precomputed outside the kernel.
    # x_ref/y_ref: VMEM tiles [row_tile, lanes] in the caller's dtype.
    mean = params_ref[0]
    coef = params_ref[1]
    d = x_ref[...].astype(jnp.float32) - mean     # compute in f32 (v5e VPU/EUP need it)
    y_ref[...] = jnp.exp(coef * (d * d)).astype(y_ref.dtype)  # square on VPU, exp on EUP


def _pick_lanes(n: int) -> int:
    """Lane width: wide rows for big inputs, 128 otherwise; both are full-vreg stores."""
    if n % _LANES == 0 and n >= _LANES * 64:
        return _LANES
    for lanes in (128, 256, 512, 1024):
        if n % lanes == 0:
            return lanes
    return 128  # unaligned: minimal padding to the next multiple of 128


def _pick_row_tile(rows: int) -> int:
    """Row tile: multiple of 8, aims for >= 4 grid steps (>= 2 per v7x TensorCore)."""
    if rows <= 8:
        return rows                       # single block covering the full row extent
    t = max(8, ((rows // 4) // 8) * 8)    # ~4 grid steps
    return min(_ROW_TILE, t, (rows // 8) * 8)


def gauss_mf(x: jax.Array, mean, std, *, min_pallas_elems: int = _PALLAS_MIN_ELEMS) -> jax.Array:
    """Gaussian membership function, equivalent to GaussMf.forward (any shape).

    Output is returned in the input dtype (native-dtype I/O keeps the kernel at
    the HBM roofline for bf16 inputs). mean/std are scalar learnable parameters,
    matching the reference module.
    """
    orig_shape = x.shape
    xf = x.reshape(-1)                    # flatten in native dtype — no upcast copy
    n = xf.shape[0]

    # Hoist all scalar math out of the vector path.
    mean_f = jnp.asarray(mean, dtype=jnp.float32)
    std_f = jnp.asarray(std, dtype=jnp.float32)
    coef = -1.0 / (2.0 * std_f * std_f)

    if n < min_pallas_elems:
        # Fast path: launch/layout overhead would dominate a mem-bound kernel.
        y = jnp.exp(coef * jnp.square(xf.astype(jnp.float32) - mean_f))
        return y.astype(x.dtype).reshape(orig_shape)

    lanes = _pick_lanes(n)
    rows = pl.cdiv(n, lanes)
    total = rows * lanes
    if total != n:
        # Rare unaligned case: pad only to the next multiple of `lanes` (< lanes elems).
        xf = jnp.pad(xf, (0, total - n))
    x2 = xf.reshape(rows, lanes)          # bitcast-style reshape for contiguous input

    row_tile = _pick_row_tile(rows)
    grid = (pl.cdiv(rows, row_tile),)     # Pallas clips the final partial row-block
    params = jnp.stack([mean_f, coef]).astype(jnp.float32)
    itemsize = jnp.dtype(x.dtype).itemsize

    y2 = pl.pallas_call(
        _gauss_kernel,
        out_shape=jax.ShapeDtypeStruct((rows, lanes), x.dtype),
        grid_spec=pltpu.PrefetchScalarGridSpec(
            num_scalar_prefetch=1,
            grid=grid,
            in_specs=[pl.BlockSpec((row_tile, lanes), lambda i, p: (i, 0))],
            out_specs=pl.BlockSpec((row_tile, lanes), lambda i, p: (i, 0)),
        ),
        compiler_params=pltpu.CompilerParams(
            dimension_semantics=("parallel",),
        ),
        cost_estimate=pl.CostEstimate(
            flops=3 * total,
            transcendentals=total,
            bytes_accessed=2 * total * itemsize,
        ),
    )(params, x2)

    y = y2.reshape(-1)
    if total != n:
        y = y[:n]
    return y.reshape(orig_shape)


def _reference(x: np.ndarray, mean: float, std: float) -> np.ndarray:
    return np.exp(-((x - mean) ** 2) / (2.0 * std ** 2)).astype(np.float32)


if __name__ == "__main__":
    # Deterministic parameter init (module __init__ takes floats mean, std).
    mean_param = 0.5
    std_param = 1.25

    key = jax.random.PRNGKey(0)
    x = jax.random.normal(key, (2, 4, 16, 16), dtype=jnp.float32)

    # Force the Pallas path for the small demo tensor (normal use would take the
    # fused-XLA fast path below ~1M elements).
    y = gauss_mf(x, jnp.float32(mean_param), jnp.float32(std_param), min_pallas_elems=0)
    y = jax.block_until_ready(y)

    y_ref = _reference(np.asarray(x), mean_param, std_param)
    np.testing.assert_allclose(np.asarray(y), y_ref, rtol=1e-5, atol=1e-6)
    print("KERNEL_OK")
</pallas_src>

<mosaic_0001>
module attributes {stable_mosaic.version = 11 : i64} {
  func.func @_gauss_kernel(%arg0: i32, %arg1: memref<2xf32, #tpu.memory_space<smem>>, %arg2: memref<8x128xf32, #tpu.memory_space<vmem>>, %arg3: memref<8x128xf32, #tpu.memory_space<vmem>>) attributes {dimension_semantics = [#tpu.dimension_semantics<parallel>], iteration_bounds = array<i64: 2>, scalar_prefetch = 1 : i64, scratch_operands = 0 : i64, tpu.core_type = #tpu.core_type<tc>, window_params = [{transform_indices = @transform_0, window_bounds = array<i64: 8, 128>}, {transform_indices = @transform_1, window_bounds = array<i64: 8, 128>}]} {
    %c0 = arith.constant 0 : index
    %0 = memref.load %arg1[%c0] : memref<2xf32, #tpu.memory_space<smem>>
    %c1 = arith.constant 1 : index
    %1 = memref.load %arg1[%c1] : memref<2xf32, #tpu.memory_space<smem>>
    %c0_0 = arith.constant 0 : index
    %c0_1 = arith.constant 0 : index
    %2 = vector.load %arg2[%c0_0, %c0_1] : memref<8x128xf32, #tpu.memory_space<vmem>>, vector<8x128xf32>
    %3 = vector.broadcast %0 : f32 to vector<8x128xf32>
    %4 = arith.subf %2, %3 : vector<8x128xf32>
    %5 = arith.mulf %4, %4 : vector<8x128xf32>
    %6 = vector.broadcast %1 : f32 to vector<8x128xf32>
    %7 = arith.mulf %6, %5 : vector<8x128xf32>
    %8 = math.exp %7 : vector<8x128xf32>
    %c0_2 = arith.constant 0 : index
    %c0_3 = arith.constant 0 : index
    %9 = vector.load %arg3[%c0_2, %c0_3] : memref<8x128xf32, #tpu.memory_space<vmem>>, vector<8x128xf32>
    tpu.vector_store %arg3[%c0_2, %c0_3], %8 {strides = array<i32>} : memref<8x128xf32, #tpu.memory_space<vmem>>, vector<8x128xf32>,
    return
  }
  func.func @transform_0(%arg0: i32, %arg1: memref<2xf32, #tpu.memory_space<smem>>) -> (i32, i32) {
    %c0_i32 = arith.constant 0 : i32
    %c0_i32_0 = arith.constant 0 : i32
    return %arg0, %c0_i32 : i32, i32
  }
  func.func @transform_1(%arg0: i32, %arg1: memref<2xf32, #tpu.memory_space<smem>>) -> (i32, i32) {
    %c0_i32 = arith.constant 0 : i32
    %c0_i32_0 = arith.constant 0 : i32
    return %arg0, %c0_i32 : i32, i32
  }
}

</mosaic_0001>

<llo_original>
// kernel: tpu_custom_call.1
$region0: #{tpu_custom_call.1}
  #allocation0 [shape = 'u32[]', space=smem, size = 0x4, offset = 0x4, fixed_abs, tag = 'smem constant byte address 0x4 - core index']
  #allocation1 [shape = 'u32[144,128]{1,0:T(1,128)}', space=vmem, size = 0x12000, scoped, tag = 'internal scratch']
  #allocation2 [shape = 's32[1]{0}', space=sflag, size = 0x4, scoped, tag = 'scoped memory for tpu_custom_call.1']
  #allocation3 [shape = 'u8[512]{0}', space=smem, size = 0x200, scoped, tag = 'prefetched SMEM operand 0']
  %s0 = inlined_call_operand.hbm [shape: f32[2], index: 0, kind: input, shape index: {}]
  %s1 = inlined_call_operand.hbm [shape: f32[16,128], index: 1, kind: input, shape index: {}]
  %s2 = inlined_call_operand.hbm [shape: f32[16,128], index: 2, kind: output, shape index: {}]
  %s3 = sld [smem:[#allocation0]]
  $region41: #{tpu_custom_call.1} parent=0
    _
  %s5 = ssub.s32 1, %s3
  %s6 = scalar_select 0, %s5, %s3
  %8 = dma.hbm_to_smem %s0, 16, [#allocation3], [#allocation2]
  %9 = dma.done [#allocation2], 16
  %10 = sfence
  $region1: #{tpu_custom_call.1} parent=0
    #allocation4 [shape = 'u8[8192]{0}', space=vmem, size = 0x2000, scoped, tag = 'input window, operand 1']
    #allocation5 [shape = 's32[2]{0}', space=sflag, size = 0x8, scoped, tag = 'scoped memory for tpu_custom_call.1']
    #allocation6 [shape = 's32[2]{0}', space=sflag, size = 0x8, scoped, tag = 'scoped memory for tpu_custom_call.1']
    #allocation7 [shape = 'u8[8192]{0}', space=vmem, size = 0x2000, scoped, tag = 'output window, operand 0']
    %11 = vsyncpa [#allocation5], 0
    %s12 = scalar_lea.sflag [#allocation5], 1
    %13 = vsyncpa %s12, 0
    %14 = vsyncpa [#allocation6], 0
    %s15 = scalar_lea.sflag [#allocation6], 1
    %16 = vsyncpa %s15, 0
    loop: start=0, step=1, limit=4
    $region2: #{tpu_custom_call.1} parent=1 // loop_pre_header
      _
    $region3: #{tpu_custom_call.1} parent=1 // loop_header
      %s18 = sphi 0, %s22
      %p19 = scmp.ge.s32.totalorder %s18, 4
      %s28 = sphi 0, %s30
      %s31 = sphi 0, %s28
      %s32 = sphi 0, %s31
      %s48 = sphi 0, %s32
      %s54 = sphi 0, %s56
      %s57 = sphi 0, %s54
      %s58 = sphi 0, %s57
      %s74 = sphi 0, %s58
    $region4: #{tpu_custom_call.1} parent=1 // loop_header_branch
      %21 = sbr.rel (%p19) target = $region8
    $region5: #{tpu_custom_call.1} parent=1 // loop_body
      %s23 = ssub.s32 %s18, 1
      %s24 = ssub.s32 %s18, 2
      %s25 = sadd.s32 %s18, 1
      %s26 = ssub.s32 %s18, %s25
      %p27 = scmp.eq.s32.totalorder %s26, 0
      %s29 = sadd.s32 %s28, 1
      %s30 = scalar_select %p27, %s28, %s29
      %p33 = pneg %p27
      %p34 = scmp.eq.s32.totalorder %s18, 1
      %p35 = por %p33, %p34
      %p36 = scmp.ne.s32.totalorder %s28, %s31
      %p37 = scmp.eq.s32.totalorder %s18, 0
      %p38 = por %p36, %p37
      %p39 = scmp.ne.s32.totalorder %s28, %s31
      %p40 = scmp.eq.s32.totalorder %s23, 1
      %p41 = por %p39, %p40
      %p42 = scmp.ne.s32.totalorder %s31, %s32
      %p43 = scmp.eq.s32.totalorder %s23, 0
      %p44 = por %p42, %p43
      %p45 = scmp.ne.s32.totalorder %s31, %s32
      %p46 = scmp.eq.s32.totalorder %s24, 1
      %p47 = por %p45, %p46
      %p49 = scmp.ne.s32.totalorder %s32, %s48
      %p50 = scmp.eq.s32.totalorder %s24, 0
      %p51 = por %p49, %p50
      %s52 = ssub.s32 %s18, %s25
      %p53 = scmp.eq.s32.totalorder %s52, 0
      %s55 = sadd.s32 %s54, 1
      %s56 = scalar_select %p53, %s54, %s55
      %p59 = pneg %p53
      %p60 = scmp.eq.s32.totalorder %s18, 1
      %p61 = por %p59, %p60
      %p62 = scmp.ne.s32.totalorder %s54, %s57
      %p63 = scmp.eq.s32.totalorder %s18, 0
      %p64 = por %p62, %p63
      %p65 = scmp.ne.s32.totalorder %s54, %s57
      %p66 = scmp.eq.s32.totalorder %s23, 1
      %p67 = por %p65, %p66
      %p68 = scmp.ne.s32.totalorder %s57, %s58
      %p69 = scmp.eq.s32.totalorder %s23, 0
      %p70 = por %p68, %p69
      %p71 = scmp.ne.s32.totalorder %s57, %s58
      %p72 = scmp.eq.s32.totalorder %s24, 1
      %p73 = por %p71, %p72
      %p75 = scmp.ne.s32.totalorder %s58, %s74
      %p76 = scmp.eq.s32.totalorder %s24, 0
      %p77 = por %p75, %p76
      %p78 = scmp.le.s32.totalorder 1, %s18
      %p79 = scmp.lt.s32.totalorder %s18, 3
      %p80 = pnand %p78, %p79
      %p81 = pneg %p80
      // Predicated region
      $region9: #{tpu_custom_call.1} parent=5 // pred_check
        _
      $region10: #{tpu_custom_call.1} parent=5 // pred_check_branch
        %83 = sbr.rel (%p80) target = $region12
      $region11: #{tpu_custom_call.1} parent=5 // pred_region
        %s84 = ssub.s32 %s18, 1
      $region12: #{tpu_custom_call.1} parent=5 // pred_fallthru
        _
      %p85 = scmp.lt.s32.totalorder %s18, 2
      // Predicated region
      $region13: #{tpu_custom_call.1} parent=5 // pred_check
        %p86 = pneg %p85
      $region14: #{tpu_custom_call.1} parent=5 // pred_check_branch
        %88 = sbr.rel (%p86) target = $region16
      $region15: #{tpu_custom_call.1} parent=5 // pred_region
        // Predicated region
        $region17: #{tpu_custom_call.1} parent=15 // pred_check
          %p89 = pneg %p38
        $region18: #{tpu_custom_call.1} parent=15 // pred_check_branch
          %91 = sbr.rel (%p89) target = $region20
        $region19: #{tpu_custom_call.1} parent=15 // pred_region
          %s92 = sand.u32 %s28, 1
          %s93 = scalar_lea.sflag [#allocation5], %s92
          %s94 = sand.u32 %s28, 1
          %s95 = smul.addr %s94, 8
          %s96 = scalar_lea.vmem [#allocation4], %s95
          %s98 = ssub.s32 128, 128
          %99 = vsyncadd %s93, %s98
          %s100 = smul.addr %s18, 128
          %s101 = scalar_lea.hbm %s1, %s100
          %s103 = sshll.u32 %s96, 4
          %s104 = int_to_ptr.vmem [resolvable:$true] %s103
          %106 = dma.hbm_to_vmem [thread:$0]  %s101, 128, %s104, %s93
        $region20: #{tpu_custom_call.1} parent=15 // pred_fallthru
          _
      $region16: #{tpu_custom_call.1} parent=5 // pred_fallthru
        _
      %p107 = scmp.le.s32.totalorder 1, %s18
      %p108 = scmp.lt.s32.totalorder %s18, 3
      %p109 = pnand %p107, %p108
      %p110 = pneg %p109
      // Predicated region
      $region21: #{tpu_custom_call.1} parent=5 // pred_check
        _
      $region22: #{tpu_custom_call.1} parent=5 // pred_check_branch
        %112 = sbr.rel (%p109) target = $region24
      $region23: #{tpu_custom_call.1} parent=5 // pred_region
        %s113 = ssub.s32 %s18, 1
        %s114 = sand.u32 %s31, 1
        %s115 = scalar_lea.sflag [#allocation5], %s114
        %s116 = sand.u32 %s31, 1
        %s117 = smul.addr %s116, 8
        %s118 = scalar_lea.vmem [#allocation4], %s117
        // Predicated region
        $region25: #{tpu_custom_call.1} parent=23 // pred_check
          %p119 = pneg %p44
        $region26: #{tpu_custom_call.1} parent=23 // pred_check_branch
          %121 = sbr.rel (%p119) target = $region28
        $region27: #{tpu_custom_call.1} parent=23 // pred_region
          %122 = dma.done %s115, 128
        $region28: #{tpu_custom_call.1} parent=23 // pred_fallthru
          _
        %s123 = sand.u32 %s31, 1
        %s124 = scalar_lea.sflag [#allocation5], %s123
        %s125 = sand.u32 %s31, 1
        %s126 = smul.addr %s125, 8
        %s127 = scalar_lea.vmem [#allocation4], %s126
        %p128 = pneg %p44
        %p129 = pneg %p41
        %p130 = pneg %p70
        %p131 = pneg %p67
        %s132 = sand.u32 %s57, 1
        %s133 = scalar_lea.sflag [#allocation6], %s132
        %s134 = sand.u32 %s57, 1
        %s135 = smul.addr %s134, 8
        %s136 = scalar_lea.vmem [#allocation7], %s135
        %s137 = sld [smem:[#allocation3]]
        %s138 = sld [smem:[#allocation3 + $0x1]]
        %v139 = vld [vmem:[%s118] sm:$0xff]
        %v140 = vstv %s137
        %v141 = vsub.f32 %v139, %v140
        %v142 = vmul.f32 %v141, %v141
        %v143 = vstv %s138
        %v144 = vmul.f32 %v143, %v142
        %v145 = vmul.f32 %v144, 1.442695
        %v146 = vpow.pop %v145
        %147 = vst [vmem:[%s136] sm:$0xff] %v146
        %s148 = sand.u32 %s57, 1
        %s149 = scalar_lea.sflag [#allocation6], %s148
        %s150 = sand.u32 %s57, 1
        %s151 = smul.addr %s150, 8
        %s152 = scalar_lea.vmem [#allocation7], %s151
        // Predicated region
        $region29: #{tpu_custom_call.1} parent=23 // pred_check
          %p153 = pneg %p67
        $region30: #{tpu_custom_call.1} parent=23 // pred_check_branch
          %155 = sbr.rel (%p153) target = $region32
        $region31: #{tpu_custom_call.1} parent=23 // pred_region
          %s157 = ssub.s32 128, 128
          %158 = vsyncadd %s149, %s157
          %s159 = smul.addr %s23, 128
          %s160 = scalar_lea.hbm %s2, %s159
          %s162 = sshll.u32 %s152, 4
          %s163 = int_to_ptr.vmem [resolvable:$true] %s162
          %165 = dma.vmem_to_hbm [thread:$0]  %s163, 128, %s160, %s149
        $region32: #{tpu_custom_call.1} parent=23 // pred_fallthru
          _
      $region24: #{tpu_custom_call.1} parent=5 // pred_fallthru
        _
      %p166 = scmp.le.s32.totalorder 2, %s18
      // Predicated region
      $region33: #{tpu_custom_call.1} parent=5 // pred_check
        %p167 = pneg %p166
      $region34: #{tpu_custom_call.1} parent=5 // pred_check_branch
        %169 = sbr.rel (%p167) target = $region36
      $region35: #{tpu_custom_call.1} parent=5 // pred_region
        %s170 = ssub.s32 %s18, 2
        // Predicated region
        $region37: #{tpu_custom_call.1} parent=35 // pred_check
          %p171 = pneg %p73
        $region38: #{tpu_custom_call.1} parent=35 // pred_check_branch
          %173 = sbr.rel (%p171) target = $region40
        $region39: #{tpu_custom_call.1} parent=35 // pred_region
          %s174 = sand.u32 %s58, 1
          %s175 = scalar_lea.sflag [#allocation6], %s174
          %s176 = sand.u32 %s58, 1
          %s177 = smul.addr %s176, 8
          %s178 = scalar_lea.vmem [#allocation7], %s177
          %179 = dma.done %s175, 128
        $region40: #{tpu_custom_call.1} parent=35 // pred_fallthru
          _
      $region36: #{tpu_custom_call.1} parent=5 // pred_fallthru
        _
    $region6: #{tpu_custom_call.1} parent=1 // loop_footer
      %s22 = sadd.s32 1, %s18
    $region7: #{tpu_custom_call.1} parent=1 // loop_footer_branch
      %17 = sbr.rel target = $region3
    $region8: #{tpu_custom_call.1} parent=1 // loop_exit
      _
    %180 = vsyncpa [#allocation5], 1
    %s181 = scalar_lea.sflag [#allocation5], 1
    %182 = vsyncpa %s181, 1
    %183 = vsyncpa [#allocation6], 1
    %s184 = scalar_lea.sflag [#allocation6], 1
    %185 = vsyncpa %s184, 1

</llo_original>
